<compile_context>
chip_gen: v5e
topology: v5e:2x2
jax: 0.10.0
libtpu: 0.0.40
codegen_flags: <defaults>
</compile_context>

<pallas_src>
import functools

import jax
import jax.numpy as jnp
from jax.experimental import pallas as pl
from jax.experimental.pallas import tpu as pltpu

BN_EPS = 1e-5  # PyTorch BatchNorm default eps


def _round_up(v, m):
    return -(-v // m) * m


def _uctri_kernel(x_ref, wt_ref, b_ref, bnk_scale_ref, bnk_bias_ref, sc_ref,
                  feat_ref, uc_ref, acc_ref, *, taylor_n, inv_hw, hw, hw_tile,
                  needs_mask):
    """Grid = (B, HW_tiles).  Streams (1, C, hw_tile) NCHW spatial tiles,
    accumulates the pooled sum in a (F, 128) VMEM scratch, and runs the
    norm/BN/Taylor epilogue on the last tile of each batch element.

    sc_ref (SMEM): [0]=bn_norm running_mean, [1]=1/sqrt(running_var+eps),
                   [2]=avg_uc, [3:3+taylor_n]=uc_k.
    """
    k = pl.program_id(1)

    @pl.when(k == 0)
    def _():
        acc_ref[...] = jnp.zeros_like(acc_ref)

    # ---- Baseline.feature stand-in: 1x1 conv + ReLU on the NCHW tile ----------
    # Canonical (M,K)@(K,N) MXU matmul: wT (F, C) @ x (C, hw_tile) -> (F, hw_tile).
    # No transposed-LHS form, so no per-tile vxpose of the streamed activation.
    x_t = x_ref[0]                                             # (C, hw_tile)
    xw = jax.lax.dot_general(
        wt_ref[...], x_t,
        dimension_numbers=(((1,), (0,)), ((), ())),
        preferred_element_type=jnp.float32)                    # (F, hw_tile) f32
    h = jnp.maximum(xw + b_ref[...], 0.0)                      # bias+ReLU (VPU, f32)

    if needs_mask:
        # Last tile may overhang HW: zero the padded spatial positions AFTER
        # bias+ReLU so ReLU(bias) does not leak into the global-average-pool.
        pos = k * hw_tile + jax.lax.broadcasted_iota(jnp.int32, (1, hw_tile), 1)
        h = jnp.where(pos < hw, h, 0.0)

    # ---- partial GAP: fold hw_tile lanes down to 128 with VPU vreg adds -------
    n_full = hw_tile // 128
    rem = hw_tile - n_full * 128
    if n_full > 0:
        p = h[:, 0:128]
        for j in range(1, n_full):                             # static unroll
            p = p + h[:, j * 128:(j + 1) * 128]
        acc_ref[...] += p
    if rem > 0:  # only the single ragged full-HW tile case (HW < 128)
        acc_ref[:, 0:rem] += h[:, n_full * 128:hw_tile]

    # ---- epilogue on the last spatial tile of this batch element --------------
    @pl.when(k == pl.num_programs(1) - 1)
    def _():
        # Final 128-lane reduction as a tiny transposed-RHS MXU matmul against a
        # ones vector: gives gf directly in lane-dense (1, F) row form.
        ones = jnp.ones((8, 128), jnp.float32)
        gf = jax.lax.dot_general(
            ones, acc_ref[...],
            dimension_numbers=(((1,), (1,)), ((), ())),
            preferred_element_type=jnp.float32)[0:1, :] * inv_hw      # (1, F)

        # UCBase.get_uc (eval, fbase='tlr', odd=2, log_norm=False)
        f_norm = jnp.sqrt(jnp.sum(gf * gf, axis=-1, keepdims=True))  # (1, 1)
        xn = (f_norm - sc_ref[0]) * sc_ref[1]                        # frozen BN(1)
        uc = jnp.zeros_like(xn)
        xp = xn
        x2 = xn * xn
        for t in range(taylor_n):                                    # x^1, x^3, ...
            uc = uc + sc_ref[3 + t] * xp
            xp = xp * x2
        uc = uc - sc_ref[2]                                          # eval: -avg_uc

        # bottleneck BatchNorm1d (eval, pre-folded) + neck_feat == 'after'
        fb = gf * bnk_scale_ref[...] + bnk_bias_ref[...]             # (1, F)
        fb_n = jnp.maximum(
            jnp.sqrt(jnp.sum(fb * fb, axis=-1, keepdims=True)), 1e-12)
        feat_ref[...] = (fb * (f_norm / fb_n))[None]                 # exact recip
        uc_ref[...] = jnp.broadcast_to(uc.reshape(1, 1, 1), uc_ref.shape)


def uctri_forward(x_nchw, params, taylor_n, *, hw_tile=512,
                  matmul_dtype=jnp.bfloat16):
    """x_nchw: (B, C, H, W), ideally already in `matmul_dtype` (bf16) to halve the
    HBM stream.  Returns (feat (B, F), uc_r (B,)) in float32.
    """
    B, C, H, W = x_nchw.shape
    HW = H * W
    x = x_nchw.reshape(B, C, HW)          # free reshape, NO HBM transpose
    if x.dtype != matmul_dtype:
        # Fallback cast for parity checks; for best HBM throughput the producer
        # should already emit x in matmul_dtype (this extra pass re-touches HBM).
        x = x.astype(matmul_dtype)

    F_ = params['conv_w'].shape[1]
    F_pad = _round_up(F_, 128)            # lane-dense epilogue / feat store

    # ---- spatial tiling: big tiles, multiple of 128, masked last tile ---------
    if HW <= 128:
        hw_tile_eff, n_hw, needs_mask = HW, 1, False       # full-dim block
    else:
        t = max(128, (int(hw_tile) // 128) * 128)
        t = min(t, _round_up(HW, 128))
        hw_tile_eff = t
        n_hw = pl.cdiv(HW, hw_tile_eff)
        needs_mask = (HW % hw_tile_eff != 0)

    # ---- one-time parameter prep (tiny) ---------------------------------------
    # Weight pre-transposed to (F, C) so the per-tile matmul is canonical MXU form.
    wt = jnp.zeros((F_pad, C), matmul_dtype)
    wt = wt.at[:F_, :].set(params['conv_w'].T.astype(matmul_dtype))
    b_col = jnp.zeros((F_pad, 1), jnp.float32)
    b_col = b_col.at[:F_, :].set(
        params['conv_b'].reshape(F_, 1).astype(jnp.float32))

    # Fold eval-mode bottleneck BatchNorm1d into per-channel scale/bias (padded
    # channels get scale*0 + 0, so they stay exactly zero downstream).
    bnk_inv = jax.lax.rsqrt(params['bnk_var'] + BN_EPS)
    bnk_scale = (params['bnk_gamma'] * bnk_inv).astype(jnp.float32)
    bnk_bias = (params['bnk_beta']
                - params['bnk_mean'] * params['bnk_gamma'] * bnk_inv
                ).astype(jnp.float32)
    bnk_scale_p = jnp.zeros((1, F_pad), jnp.float32).at[:, :F_].set(bnk_scale)
    bnk_bias_p = jnp.zeros((1, F_pad), jnp.float32).at[:, :F_].set(bnk_bias)

    # Pack tiny scalars into one SMEM array:
    # [bn_norm mean, 1/sqrt(bn_norm var + eps), avg_uc, uc_k[0..taylor_n-1]]
    scalars = jnp.concatenate([
        params['bn_norm_stats'][0, 0:1],
        jax.lax.rsqrt(params['bn_norm_stats'][0, 1:2] + BN_EPS),
        params['avg_uc'][0, 0:1],
        params['uc_k'][0],
    ]).astype(jnp.float32)

    # ---- explicit VMEM budget (matters most on v7x's 64 MiB VMEM) -------------
    itemsize = jnp.dtype(matmul_dtype).itemsize
    vmem_est = (2 * C * hw_tile_eff * itemsize      # double-buffered x tiles
                + F_pad * C * itemsize              # resident wT (single-buffered)
                + F_pad * hw_tile_eff * 4           # (F, hw_tile) f32 intermediate
                + F_pad * 128 * 4                   # GAP accumulator scratch
                + 4 * F_pad * 128 * 4)              # small params / outputs (padded)
    vmem_limit = int(min(max(2 * vmem_est, 32 * 1024 * 1024), 64 * 1024 * 1024))

    kernel = functools.partial(
        _uctri_kernel, taylor_n=taylor_n, inv_hw=1.0 / HW, hw=HW,
        hw_tile=hw_tile_eff, needs_mask=needs_mask)

    feat3, uc3 = pl.pallas_call(
        kernel,
        out_shape=(jax.ShapeDtypeStruct((B, 1, F_pad), jnp.float32),
                   jax.ShapeDtypeStruct((B, 1, 128), jnp.float32)),
        grid_spec=pltpu.PrefetchScalarGridSpec(
            num_scalar_prefetch=0,
            grid=(B, n_hw),
            in_specs=[
                # x streamed in (1, C, hw_tile) NCHW tiles (double-buffered DMA).
                # If DMA latency is still exposed at large hw_tile, raise this to
                # pipeline_mode=pl.Buffered(3) (check VMEM headroom first).
                pl.BlockSpec((1, C, hw_tile_eff), lambda bi, ki: (bi, 0, ki)),
                # resident parameters: constant block index, single-buffered
                pl.BlockSpec((F_pad, C), lambda bi, ki: (0, 0),
                             pipeline_mode=pl.Buffered(1)),
                pl.BlockSpec((F_pad, 1), lambda bi, ki: (0, 0),
                             pipeline_mode=pl.Buffered(1)),
                pl.BlockSpec((1, F_pad), lambda bi, ki: (0, 0),
                             pipeline_mode=pl.Buffered(1)),
                pl.BlockSpec((1, F_pad), lambda bi, ki: (0, 0),
                             pipeline_mode=pl.Buffered(1)),
                # packed scalars ride SMEM (scalar load path)
                pl.BlockSpec(memory_space=pltpu.MemorySpace.SMEM),
            ],
            out_specs=(
                pl.BlockSpec((1, 1, F_pad), lambda bi, ki: (bi, 0, 0)),
                pl.BlockSpec((1, 1, 128), lambda bi, ki: (bi, 0, 0)),
            ),
            scratch_shapes=[pltpu.VMEM((F_pad, 128), jnp.float32)],
        ),
        compiler_params=pltpu.CompilerParams(
            dimension_semantics=("parallel", "arbitrary"),
            vmem_limit_bytes=vmem_limit),
    )(x, wt, b_col, bnk_scale_p, bnk_bias_p, scalars)

    return feat3[:, 0, :F_], uc3[:, 0, 0]


def _reference(x_nchw, params, taylor_n):
    """Pure-JAX (f32) reference of the same eval-mode forward."""
    B, C, H, W = x_nchw.shape
    x = jnp.transpose(x_nchw, (0, 2, 3, 1)).reshape(B, H * W, C)
    h = jnp.maximum(jnp.einsum('bsc,cf->bsf', x, params['conv_w'])
                    + params['conv_b'][None], 0.0)
    gf = jnp.mean(h, axis=1)
    f_norm = jnp.linalg.norm(gf, axis=-1, keepdims=True)
    xn = (f_norm - params['bn_norm_stats'][0, 0]) \
        / jnp.sqrt(params['bn_norm_stats'][0, 1] + BN_EPS)
    powers = jnp.concatenate([xn ** (2 * t + 1) for t in range(taylor_n)], axis=-1)
    uc = jnp.sum(params['uc_k'][0] * powers, axis=-1) - params['avg_uc'][0, 0]
    fb = (gf - params['bnk_mean']) / jnp.sqrt(params['bnk_var'] + BN_EPS) \
        * params['bnk_gamma'] + params['bnk_beta']
    fb_n = jnp.maximum(jnp.linalg.norm(fb, axis=-1, keepdims=True), 1e-12)
    return fb / fb_n * f_norm, uc


if __name__ == "__main__":
    # Small shapes: batch=2, in-channels=4, spatial=16x16, feature width F=32.
    B, C, H, W = 2, 4, 16, 16
    F_ = 32
    TAYLOR_N = 5   # UCBase default (fbase='tlr', odd=2) -> uc_k has 5 entries

    key = jax.random.PRNGKey(0)
    kx, kw, kb, kk = jax.random.split(key, 4)

    # Producer emits bf16 activations -> the kernel streams half the HBM bytes.
    x = jax.random.normal(kx, (B, C, H, W), dtype=jnp.float32).astype(jnp.bfloat16)

    params = {
        # synthetic Baseline feature extractor (1x1 conv)
        'conv_w': 0.5 * jax.random.normal(kw, (C, F_), dtype=jnp.float32),
        'conv_b': 0.1 * jax.random.normal(kb, (1, F_), dtype=jnp.float32),
        # UCBase.uc_k (zeros in __init__; small random here to exercise the path)
        'uc_k': 0.05 * jax.random.normal(kk, (1, TAYLOR_N), dtype=jnp.float32),
        # bn_norm running stats [mean, var]; weight=1, bias=0 (frozen in __init__)
        'bn_norm_stats': jnp.array([[2.0, 1.0]], dtype=jnp.float32),
        # registered buffer avg_uc
        'avg_uc': jnp.zeros((1, 1), dtype=jnp.float32),
        # bottleneck BatchNorm1d(F) eval params / running stats (PyTorch defaults)
        'bnk_gamma': jnp.ones((1, F_), dtype=jnp.float32),
        'bnk_beta': jnp.zeros((1, F_), dtype=jnp.float32),
        'bnk_mean': jnp.zeros((1, F_), dtype=jnp.float32),
        'bnk_var': jnp.ones((1, F_), dtype=jnp.float32),
    }

    feat, uc_r = uctri_forward(x, params, TAYLOR_N)
    jax.block_until_ready((feat, uc_r))

    ref_feat, ref_uc = _reference(x.astype(jnp.float32), params, TAYLOR_N)
    assert jnp.allclose(feat, ref_feat, rtol=1e-2, atol=1e-2), "feat mismatch"
    assert jnp.allclose(uc_r, ref_uc, rtol=1e-2, atol=1e-2), "uc_r mismatch"

    print("KERNEL_OK")
</pallas_src>

<mosaic_0001>
module attributes {stable_mosaic.version = 11 : i64} {
  func.func @_uctri_kernel(%arg0: i32, %arg1: i32, %arg2: memref<1x4x256xbf16, #tpu.memory_space<vmem>>, %arg3: memref<128x4xbf16, #tpu.memory_space<vmem>>, %arg4: memref<128x1xf32, #tpu.memory_space<vmem>>, %arg5: memref<1x128xf32, #tpu.memory_space<vmem>>, %arg6: memref<1x128xf32, #tpu.memory_space<vmem>>, %arg7: memref<8xf32, #tpu.memory_space<smem>>, %arg8: memref<1x1x128xf32, #tpu.memory_space<vmem>>, %arg9: memref<1x1x128xf32, #tpu.memory_space<vmem>>, %arg10: memref<128x128xf32, #tpu.memory_space<vmem>>) attributes {dimension_semantics = [#tpu.dimension_semantics<parallel>, #tpu.dimension_semantics<arbitrary>], iteration_bounds = array<i64: 2, 1>, scalar_prefetch = 0 : i64, scratch_operands = 1 : i64, tpu.core_type = #tpu.core_type<tc>, window_params = [{transform_indices = @transform_0, window_bounds = array<i64: 1, 4, 256>}, {pipeline_mode = #tpu.pipeline_mode<synchronous>, transform_indices = @transform_1, window_bounds = array<i64: 128, 4>}, {pipeline_mode = #tpu.pipeline_mode<synchronous>, transform_indices = @transform_2, window_bounds = array<i64: 128, 1>}, {pipeline_mode = #tpu.pipeline_mode<synchronous>, transform_indices = @transform_3, window_bounds = array<i64: 1, 128>}, {pipeline_mode = #tpu.pipeline_mode<synchronous>, transform_indices = @transform_4, window_bounds = array<i64: 1, 128>}, {transform_indices = @transform_5, window_bounds = array<i64: 8>}, {transform_indices = @transform_6, window_bounds = array<i64: 1, 1, 128>}, {transform_indices = @transform_7, window_bounds = array<i64: 1, 1, 128>}]} {
    %c0_i32 = arith.constant 0 : i32
    %0 = arith.cmpi eq, %arg1, %c0_i32 : i32
    %1 = arith.extui %0 : i1 to i32
    %c0_i32_0 = arith.constant 0 : i32
    %2 = arith.cmpi ne, %1, %c0_i32_0 : i32
    scf.if %2 {
      %cst_14 = arith.constant 0.000000e+00 : f32
      %21 = vector.broadcast %cst_14 : f32 to vector<128x128xf32>
      %c0_15 = arith.constant 0 : index
      %c0_16 = arith.constant 0 : index
      %22 = vector.load %arg10[%c0_15, %c0_16] : memref<128x128xf32, #tpu.memory_space<vmem>>, vector<128x128xf32>
      tpu.vector_store %arg10[%c0_15, %c0_16], %21 {strides = array<i32>} : memref<128x128xf32, #tpu.memory_space<vmem>>, vector<128x128xf32>,
    } else {
    }
    %c0 = arith.constant 0 : index
    %c0_1 = arith.constant 0 : index
    %c0_2 = arith.constant 0 : index
    %3 = vector.load %arg2[%c0, %c0_1, %c0_2] : memref<1x4x256xbf16, #tpu.memory_space<vmem>>, vector<1x4x256xbf16>
    %4 = vector.shape_cast %3 : vector<1x4x256xbf16> to vector<4x256xbf16>
    %c0_3 = arith.constant 0 : index
    %c0_4 = arith.constant 0 : index
    %5 = vector.load %arg3[%c0_3, %c0_4] : memref<128x4xbf16, #tpu.memory_space<vmem>>, vector<128x4xbf16>
    %cst = arith.constant dense<0.000000e+00> : vector<128x256xf32>
    %6 = tpu.matmul %5, %4, %cst {dimension_numbers = #tpu.dot_dimension_numbers<[1], [0], [0], [1], [0, 0, 1, 1], [], []>} : vector<128x4xbf16>, vector<4x256xbf16>, vector<128x256xf32> -> vector<128x256xf32>
    %c0_5 = arith.constant 0 : index
    %c0_6 = arith.constant 0 : index
    %7 = vector.load %arg4[%c0_5, %c0_6] : memref<128x1xf32, #tpu.memory_space<vmem>>, vector<128x1xf32>
    %8 = vector.broadcast %7 : vector<128x1xf32> to vector<128x256xf32>
    %9 = arith.addf %6, %8 : vector<128x256xf32>
    %cst_7 = arith.constant 0.000000e+00 : f32
    %10 = vector.broadcast %cst_7 : f32 to vector<128x256xf32>
    %11 = arith.maximumf %9, %10 : vector<128x256xf32>
    %12 = vector.extract_strided_slice %11 {offsets = [0, 0], sizes = [128, 128], strides = [1, 1]} : vector<128x256xf32> to vector<128x128xf32>
    %13 = vector.extract_strided_slice %11 {offsets = [0, 128], sizes = [128, 128], strides = [1, 1]} : vector<128x256xf32> to vector<128x128xf32>
    %14 = arith.addf %12, %13 : vector<128x128xf32>
    %c0_8 = arith.constant 0 : index
    %c0_9 = arith.constant 0 : index
    %15 = vector.load %arg10[%c0_8, %c0_9] : memref<128x128xf32, #tpu.memory_space<vmem>>, vector<128x128xf32>
    %16 = arith.addf %15, %14 : vector<128x128xf32>
    %c0_10 = arith.constant 0 : index
    %c0_11 = arith.constant 0 : index
    %17 = vector.load %arg10[%c0_10, %c0_11] : memref<128x128xf32, #tpu.memory_space<vmem>>, vector<128x128xf32>
    tpu.vector_store %arg10[%c0_10, %c0_11], %16 {strides = array<i32>} : memref<128x128xf32, #tpu.memory_space<vmem>>, vector<128x128xf32>,
    %c0_i32_12 = arith.constant 0 : i32
    %18 = arith.cmpi eq, %arg1, %c0_i32_12 : i32
    %19 = arith.extui %18 : i1 to i32
    %c0_i32_13 = arith.constant 0 : i32
    %20 = arith.cmpi ne, %19, %c0_i32_13 : i32
    scf.if %20 {
      %cst_14 = arith.constant 1.000000e+00 : f32
      %21 = vector.broadcast %cst_14 : f32 to vector<8x128xf32>
      %c0_15 = arith.constant 0 : index
      %c0_16 = arith.constant 0 : index
      %22 = vector.load %arg10[%c0_15, %c0_16] : memref<128x128xf32, #tpu.memory_space<vmem>>, vector<128x128xf32>
      %cst_17 = arith.constant dense<0.000000e+00> : vector<8x128xf32>
      %23 = tpu.matmul %21, %22, %cst_17 {dimension_numbers = #tpu.dot_dimension_numbers<[1], [1], [0], [0], [0, 0, 1, 0], [], []>} : vector<8x128xf32>, vector<128x128xf32>, vector<8x128xf32> -> vector<8x128xf32>
      %24 = vector.extract_strided_slice %23 {offsets = [0, 0], sizes = [1, 128], strides = [1, 1]} : vector<8x128xf32> to vector<1x128xf32>
      %cst_18 = arith.constant 3.906250e-03 : f32
      %25 = vector.broadcast %cst_18 : f32 to vector<1x128xf32>
      %26 = arith.mulf %24, %25 : vector<1x128xf32>
      %27 = arith.mulf %26, %26 : vector<1x128xf32>
      %cst_19 = arith.constant dense<0.000000e+00> : vector<1xf32>
      %28 = vector.multi_reduction <add>, %27, %cst_19 [1] : vector<1x128xf32> to vector<1xf32>
      %29 = vector.shape_cast %28 : vector<1xf32> to vector<1x1xf32>
      %30 = math.sqrt %29 : vector<1x1xf32>
      %c0_20 = arith.constant 0 : index
      %31 = memref.load %arg7[%c0_20] : memref<8xf32, #tpu.memory_space<smem>>
      %32 = vector.broadcast %31 : f32 to vector<1x1xf32>
      %33 = arith.subf %30, %32 : vector<1x1xf32>
      %c1 = arith.constant 1 : index
      %34 = memref.load %arg7[%c1] : memref<8xf32, #tpu.memory_space<smem>>
      %35 = vector.broadcast %34 : f32 to vector<1x1xf32>
      %36 = arith.mulf %33, %35 : vector<1x1xf32>
      %cst_21 = arith.constant 0.000000e+00 : f32
      %37 = vector.broadcast %cst_21 : f32 to vector<1x1xf32>
      %38 = arith.mulf %36, %36 : vector<1x1xf32>
      %c3 = arith.constant 3 : index
      %39 = memref.load %arg7[%c3] : memref<8xf32, #tpu.memory_space<smem>>
      %40 = vector.broadcast %39 : f32 to vector<1x1xf32>
      %41 = arith.mulf %40, %36 : vector<1x1xf32>
      %42 = arith.addf %37, %41 : vector<1x1xf32>
      %43 = arith.mulf %36, %38 : vector<1x1xf32>
      %c4 = arith.constant 4 : index
      %44 = memref.load %arg7[%c4] : memref<8xf32, #tpu.memory_space<smem>>
      %45 = vector.broadcast %44 : f32 to vector<1x1xf32>
      %46 = arith.mulf %45, %43 : vector<1x1xf32>
      %47 = arith.addf %42, %46 : vector<1x1xf32>
      %48 = arith.mulf %43, %38 : vector<1x1xf32>
      %c5 = arith.constant 5 : index
      %49 = memref.load %arg7[%c5] : memref<8xf32, #tpu.memory_space<smem>>
      %50 = vector.broadcast %49 : f32 to vector<1x1xf32>
      %51 = arith.mulf %50, %48 : vector<1x1xf32>
      %52 = arith.addf %47, %51 : vector<1x1xf32>
      %53 = arith.mulf %48, %38 : vector<1x1xf32>
      %c6 = arith.constant 6 : index
      %54 = memref.load %arg7[%c6] : memref<8xf32, #tpu.memory_space<smem>>
      %55 = vector.broadcast %54 : f32 to vector<1x1xf32>
      %56 = arith.mulf %55, %53 : vector<1x1xf32>
      %57 = arith.addf %52, %56 : vector<1x1xf32>
      %58 = arith.mulf %53, %38 : vector<1x1xf32>
      %c7 = arith.constant 7 : index
      %59 = memref.load %arg7[%c7] : memref<8xf32, #tpu.memory_space<smem>>
      %60 = vector.broadcast %59 : f32 to vector<1x1xf32>
      %61 = arith.mulf %60, %58 : vector<1x1xf32>
      %62 = arith.addf %57, %61 : vector<1x1xf32>
      %c2 = arith.constant 2 : index
      %63 = memref.load %arg7[%c2] : memref<8xf32, #tpu.memory_space<smem>>
      %64 = vector.broadcast %63 : f32 to vector<1x1xf32>
      %65 = arith.subf %62, %64 : vector<1x1xf32>
      %c0_22 = arith.constant 0 : index
      %c0_23 = arith.constant 0 : index
      %66 = vector.load %arg5[%c0_22, %c0_23] : memref<1x128xf32, #tpu.memory_space<vmem>>, vector<1x128xf32>
      %67 = arith.mulf %26, %66 : vector<1x128xf32>
      %c0_24 = arith.constant 0 : index
      %c0_25 = arith.constant 0 : index
      %68 = vector.load %arg6[%c0_24, %c0_25] : memref<1x128xf32, #tpu.memory_space<vmem>>, vector<1x128xf32>
      %69 = arith.addf %67, %68 : vector<1x128xf32>
      %70 = arith.mulf %69, %69 : vector<1x128xf32>
      %cst_26 = arith.constant dense<0.000000e+00> : vector<1xf32>
      %71 = vector.multi_reduction <add>, %70, %cst_26 [1] : vector<1x128xf32> to vector<1xf32>
      %72 = vector.shape_cast %71 : vector<1xf32> to vector<1x1xf32>
      %73 = math.sqrt %72 : vector<1x1xf32>
      %cst_27 = arith.constant 9.99999996E-13 : f32
      %74 = vector.broadcast %cst_27 : f32 to vector<1x1xf32>
      %75 = arith.maximumf %73, %74 : vector<1x1xf32>
      %76 = arith.divf %30, %75 : vector<1x1xf32>
      %77 = vector.broadcast %76 : vector<1x1xf32> to vector<1x128xf32>
      %78 = arith.mulf %69, %77 : vector<1x128xf32>
      %79 = vector.shape_cast %78 : vector<1x128xf32> to vector<1x1x128xf32>
      %c0_28 = arith.constant 0 : index
      %c0_29 = arith.constant 0 : index
      %c0_30 = arith.constant 0 : index
      %80 = vector.load %arg8[%c0_28, %c0_29, %c0_30] : memref<1x1x128xf32, #tpu.memory_space<vmem>>, vector<1x1x128xf32>
      tpu.vector_store %arg8[%c0_28, %c0_29, %c0_30], %79 {strides = array<i32>} : memref<1x1x128xf32, #tpu.memory_space<vmem>>, vector<1x1x128xf32>,
      %81 = vector.shape_cast %65 : vector<1x1xf32> to vector<1x1x1xf32>
      %82 = vector.shape_cast %81 : vector<1x1x1xf32> to vector<1x1x1xf32>
      %83 = vector.broadcast %82 : vector<1x1x1xf32> to vector<1x1x128xf32>
      %c0_31 = arith.constant 0 : index
      %c0_32 = arith.constant 0 : index
      %c0_33 = arith.constant 0 : index
      %84 = vector.load %arg9[%c0_31, %c0_32, %c0_33] : memref<1x1x128xf32, #tpu.memory_space<vmem>>, vector<1x1x128xf32>
      tpu.vector_store %arg9[%c0_31, %c0_32, %c0_33], %83 {strides = array<i32>} : memref<1x1x128xf32, #tpu.memory_space<vmem>>, vector<1x1x128xf32>,
    } else {
    }
    return
  }
  func.func @transform_0(%arg0: i32, %arg1: i32) -> (i32, i32, i32) {
    %c0_i32 = arith.constant 0 : i32
    %c0_i32_0 = arith.constant 0 : i32
    return %arg0, %c0_i32, %arg1 : i32, i32, i32
  }
  func.func @transform_1(%arg0: i32, %arg1: i32) -> (i32, i32) {
    %c0_i32 = arith.constant 0 : i32
    %c0_i32_0 = arith.constant 0 : i32
    %c0_i32_1 = arith.constant 0 : i32
    return %c0_i32, %c0_i32_0 : i32, i32
  }
  func.func @transform_2(%arg0: i32, %arg1: i32) -> (i32, i32) {
    %c0_i32 = arith.constant 0 : i32
    %c0_i32_0 = arith.constant 0 : i32
    %c0_i32_1 = arith.constant 0 : i32
    return %c0_i32, %c0_i32_0 : i32, i32
  }
  func.func @transform_3(%arg0: i32, %arg1: i32) -> (i32, i32) {
    %c0_i32 = arith.constant 0 : i32
    %c0_i32_0 = arith.constant 0 : i32
    %c0_i32_1 = arith.constant 0 : i32
    return %c0_i32, %c0_i32_0 : i32, i32
  }
  func.func @transform_4(%arg0: i32, %arg1: i32) -> (i32, i32) {
    %c0_i32 = arith.constant 0 : i32
    %c0_i32_0 = arith.constant 0 : i32
    %c0_i32_1 = arith.constant 0 : i32
    return %c0_i32, %c0_i32_0 : i32, i32
  }
  func.func @transform_5(%arg0: i32, %arg1: i32) -> i32 {
    %c0_i32 = arith.constant 0 : i32
    %c0_i32_0 = arith.constant 0 : i32
    return %c0_i32 : i32
  }
  func.func @transform_6(%arg0: i32, %arg1: i32) -> (i32, i32, i32) {
    %c0_i32 = arith.constant 0 : i32
    %c0_i32_0 = arith.constant 0 : i32
    %c0_i32_1 = arith.constant 0 : i32
    return %arg0, %c0_i32, %c0_i32_0 : i32, i32, i32
  }
  func.func @transform_7(%arg0: i32, %arg1: i32) -> (i32, i32, i32) {
    %c0_i32 = arith.constant 0 : i32
    %c0_i32_0 = arith.constant 0 : i32
    %c0_i32_1 = arith.constant 0 : i32
    return %arg0, %c0_i32, %c0_i32_0 : i32, i32, i32
  }
}

</mosaic_0001>

<llo_original>
// kernel: tpu_custom_call.1
$region0: #{tpu_custom_call.1}
  #allocation0 [shape = 'u32[]', space=smem, size = 0x4, offset = 0x4, fixed_abs, tag = 'smem constant byte address 0x4 - core index']
  #allocation1 [shape = 'u32[72,128]{1,0:T(1,128)}', space=vmem, size = 0x9000, scoped, tag = 'internal scratch']
  #allocation2 [shape = 'f32[128,128]{1,0:T(8,128)}', space=vmem, size = 0x10000, scoped, tag = 'scratch operand']
  %s0 = inlined_call_operand.vmem [shape: bf16[2,4,256], index: 0, kind: input, shape index: {}]
  %s1 = inlined_call_operand.vmem [shape: bf16[128,4], index: 1, kind: input, shape index: {}]
  %s2 = inlined_call_operand.vmem [shape: f32[128,1], index: 2, kind: input, shape index: {}]
  %s3 = inlined_call_operand.vmem [shape: f32[1,128], index: 3, kind: input, shape index: {}]
  %s4 = inlined_call_operand.vmem [shape: f32[1,128], index: 4, kind: input, shape index: {}]
  %s5 = inlined_call_operand.vmem [shape: f32[8], index: 5, kind: input, shape index: {}]
  %s6 = inlined_call_operand.hbm [shape: f32[2,1,128], index: 6, kind: output, shape index: {0}]
  %s7 = inlined_call_operand.hbm [shape: f32[2,1,128], index: 7, kind: output, shape index: {1}]
  %8 = xla_tuple %s6, %s7
  %s9 = sld [smem:[#allocation0]]
  $region77: #{tpu_custom_call.1} parent=0
    _
  %s11 = ssub.s32 1, %s9
  %s12 = scalar_select 0, %s11, %s9
  $region1: #{tpu_custom_call.1} parent=0
    #allocation3 [shape = 'u8[512]{0}', space=smem, size = 0x200, scoped, tag = 'input window, operand 5, single buffered']
    #allocation4 [shape = 's32[2]{0}', space=sflag, size = 0x8, scoped, tag = 'scoped memory for tpu_custom_call.1']
    #allocation5 [shape = 's32[2]{0}', space=sflag, size = 0x8, scoped, tag = 'scoped memory for tpu_custom_call.1']
    #allocation6 [shape = 'u8[1024]{0}', space=vmem, size = 0x400, scoped, tag = 'output window, operand 0']
    #allocation7 [shape = 'u8[1024]{0}', space=vmem, size = 0x400, scoped, tag = 'output window, operand 1']
    #allocation8 [shape = 's32[2]{0}', space=sflag, size = 0x8, scoped, tag = 'scoped memory for tpu_custom_call.1']
    %13 = vsyncpa [#allocation5], 0
    %14 = vsyncpa [#allocation4], 0
    %s15 = scalar_lea.sflag [#allocation4], 1
    %16 = vsyncpa %s15, 0
    %17 = vsyncpa [#allocation8], 0
    %s18 = scalar_lea.sflag [#allocation8], 1
    %19 = vsyncpa %s18, 0
    loop: start=0, step=1, limit=4
    $region2: #{tpu_custom_call.1} parent=1 // loop_pre_header
      _
    $region3: #{tpu_custom_call.1} parent=1 // loop_header
      %s21 = sphi 0, %s25
      %p22 = scmp.ge.s32.totalorder %s21, 4
      %s28 = sphi 0, %s40
      %s29 = sphi 0, %s36
      %s30 = sphi 0, %s28
      %s31 = sphi 0, %s29
      %s32 = sphi 0, %s30
      %s33 = sphi 0, %s31
      %s45 = sphi 0, %s47
      %s48 = sphi 0, %s45
      %s49 = sphi 0, %s48
      %s65 = sphi 0, %s49
      %s69 = sphi 0, %s69
      %s71 = sphi 0, %s69
      %s72 = sphi 0, %s71
      %s86 = sphi 0, %s72
      %s90 = sphi 0, %s90
      %s92 = sphi 0, %s90
      %s93 = sphi 0, %s92
      %s107 = sphi 0, %s93
      %s111 = sphi 0, %s111
      %s113 = sphi 0, %s111
      %s114 = sphi 0, %s113
      %s128 = sphi 0, %s114
      %s132 = sphi 0, %s132
      %s134 = sphi 0, %s132
      %s135 = sphi 0, %s134
      %s149 = sphi 0, %s135
      %s153 = sphi 0, %s153
      %s155 = sphi 0, %s153
      %s156 = sphi 0, %s155
      %s170 = sphi 0, %s156
      %s176 = sphi 0, %s178
      %s179 = sphi 0, %s176
      %s180 = sphi 0, %s179
      %s196 = sphi 0, %s180
      %s202 = sphi 0, %s204
      %s205 = sphi 0, %s202
      %s206 = sphi 0, %s205
      %s222 = sphi 0, %s206
    $region4: #{tpu_custom_call.1} parent=1 // loop_header_branch
      %24 = sbr.rel (%p22) target = $region8
    $region5: #{tpu_custom_call.1} parent=1 // loop_body
      %s26 = ssub.s32 %s21, 1
      %s27 = ssub.s32 %s21, 2
      %s34 = sadd.s32 1, %s29
      %p35 = scmp.ge.s32.totalorder %s34, 1
      %s36 = scalar_select %p35, 0, %s34
      %s37 = sadd.s32 1, %s28
      %s38 = scalar_select %p35, %s37, %s28
      %p39 = scmp.ge.s32.totalorder %s38, 2
      %s40 = scalar_select %p39, 0, %s38
      %s41 = ssub.s32 %s28, %s40
      %s42 = ssub.s32 %s29, %s36
      %s43 = sor.u32 %s41, %s42
      %p44 = scmp.eq.s32.totalorder %s43, 0
      %s46 = sadd.s32 %s45, 1
      %s47 = scalar_select %p44, %s45, %s46
      %p50 = pneg %p44
      %p51 = scmp.eq.s32.totalorder %s21, 1
      %p52 = por %p50, %p51
      %p53 = scmp.ne.s32.totalorder %s45, %s48
      %p54 = scmp.eq.s32.totalorder %s21, 0
      %p55 = por %p53, %p54
      %p56 = scmp.ne.s32.totalorder %s45, %s48
      %p57 = scmp.eq.s32.totalorder %s26, 1
      %p58 = por %p56, %p57
      %p59 = scmp.ne.s32.totalorder %s48, %s49
      %p60 = scmp.eq.s32.totalorder %s26, 0
      %p61 = por %p59, %p60
      %p62 = scmp.ne.s32.totalorder %s48, %s49
      %p63 = scmp.eq.s32.totalorder %s27, 1
      %p64 = por %p62, %p63
      %p66 = scmp.ne.s32.totalorder %s49, %s65
      %p67 = scmp.eq.s32.totalorder %s27, 0
      %p68 = por %p66, %p67
      %s70 = sadd.s32 %s69, 1
      %p73 = scmp.eq.s32.totalorder %s21, 1
      %p74 = scmp.ne.s32.totalorder %s69, %s71
      %p75 = scmp.eq.s32.totalorder %s21, 0
      %p76 = por %p74, %p75
      %p77 = scmp.ne.s32.totalorder %s69, %s71
      %p78 = scmp.eq.s32.totalorder %s26, 1
      %p79 = por %p77, %p78
      %p80 = scmp.ne.s32.totalorder %s71, %s72
      %p81 = scmp.eq.s32.totalorder %s26, 0
      %p82 = por %p80, %p81
      %p83 = scmp.ne.s32.totalorder %s71, %s72
      %p84 = scmp.eq.s32.totalorder %s27, 1
      %p85 = por %p83, %p84
      %p87 = scmp.ne.s32.totalorder %s72, %s86
      %p88 = scmp.eq.s32.totalorder %s27, 0
      %p89 = por %p87, %p88
      %s91 = sadd.s32 %s90, 1
      %p94 = scmp.eq.s32.totalorder %s21, 1
      %p95 = scmp.ne.s32.totalorder %s90, %s92
      %p96 = scmp.eq.s32.totalorder %s21, 0
      %p97 = por %p95, %p96
      %p98 = scmp.ne.s32.totalorder %s90, %s92
      %p99 = scmp.eq.s32.totalorder %s26, 1
      %p100 = por %p98, %p99
      %p101 = scmp.ne.s32.totalorder %s92, %s93
      %p102 = scmp.eq.s32.totalorder %s26, 0
      %p103 = por %p101, %p102
      %p104 = scmp.ne.s32.totalorder %s92, %s93
      %p105 = scmp.eq.s32.totalorder %s27, 1
      %p106 = por %p104, %p105
      %p108 = scmp.ne.s32.totalorder %s93, %s107
      %p109 = scmp.eq.s32.totalorder %s27, 0
      %p110 = por %p108, %p109
      %s112 = sadd.s32 %s111, 1
      %p115 = scmp.eq.s32.totalorder %s21, 1
      %p116 = scmp.ne.s32.totalorder %s111, %s113
      %p117 = scmp.eq.s32.totalorder %s21, 0
      %p118 = por %p116, %p117
      %p119 = scmp.ne.s32.totalorder %s111, %s113
      %p120 = scmp.eq.s32.totalorder %s26, 1
      %p121 = por %p119, %p120
      %p122 = scmp.ne.s32.totalorder %s113, %s114
      %p123 = scmp.eq.s32.totalorder %s26, 0
      %p124 = por %p122, %p123
      %p125 = scmp.ne.s32.totalorder %s113, %s114
      %p126 = scmp.eq.s32.totalorder %s27, 1
      %p127 = por %p125, %p126
      %p129 = scmp.ne.s32.totalorder %s114, %s128
      %p130 = scmp.eq.s32.totalorder %s27, 0
      %p131 = por %p129, %p130
      %s133 = sadd.s32 %s132, 1
      %p136 = scmp.eq.s32.totalorder %s21, 1
      %p137 = scmp.ne.s32.totalorder %s132, %s134
      %p138 = scmp.eq.s32.totalorder %s21, 0
      %p139 = por %p137, %p138
      %p140 = scmp.ne.s32.totalorder %s132, %s134
      %p141 = scmp.eq.s32.totalorder %s26, 1
      %p142 = por %p140, %p141
      %p143 = scmp.ne.s32.totalorder %s134, %s135
      %p144 = scmp.eq.s32.totalorder %s26, 0
      %p145 = por %p143, %p144
      %p146 = scmp.ne.s32.totalorder %s134, %s135
      %p147 = scmp.eq.s32.totalorder %s27, 1
      %p148 = por %p146, %p147
      %p150 = scmp.ne.s32.totalorder %s135, %s149
      %p151 = scmp.eq.s32.totalorder %s27, 0
      %p152 = por %p150, %p151
      %s154 = sadd.s32 %s153, 1
      %p157 = scmp.eq.s32.totalorder %s21, 1
      %p158 = scmp.ne.s32.totalorder %s153, %s155
      %p159 = scmp.eq.s32.totalorder %s21, 0
      %p160 = por %p158, %p159
      %p161 = scmp.ne.s32.totalorder %s153, %s155
      %p162 = scmp.eq.s32.totalorder %s26, 1
      %p163 = por %p161, %p162
      %p164 = scmp.ne.s32.totalorder %s155, %s156
      %p165 = scmp.eq.s32.totalorder %s26, 0
      %p166 = por %p164, %p165
      %p167 = scmp.ne.s32.totalorder %s155, %s156
      %p168 = scmp.eq.s32.totalorder %s27, 1
      %p169 = por %p167, %p168
      %p171 = scmp.ne.s32.totalorder %s156, %s170
      %p172 = scmp.eq.s32.totalorder %s27, 0
      %p173 = por %p171, %p172
      %s174 = ssub.s32 %s28, %s40
      %p175 = scmp.eq.s32.totalorder %s174, 0
      %s177 = sadd.s32 %s176, 1
      %s178 = scalar_select %p175, %s176, %s177
      %p181 = pneg %p175
      %p182 = scmp.eq.s32.totalorder %s21, 1
      %p183 = por %p181, %p182
      %p184 = scmp.ne.s32.totalorder %s176, %s179
      %p185 = scmp.eq.s32.totalorder %s21, 0
      %p186 = por %p184, %p185
      %p187 = scmp.ne.s32.totalorder %s176, %s179
      %p188 = scmp.eq.s32.totalorder %s26, 1
      %p189 = por %p187, %p188
      %p190 = scmp.ne.s32.totalorder %s179, %s180
      %p191 = scmp.eq.s32.totalorder %s26, 0
      %p192 = por %p190, %p191
      %p193 = scmp.ne.s32.totalorder %s179, %s180
      %p194 = scmp.eq.s32.totalorder %s27, 1
      %p195 = por %p193, %p194
      %p197 = scmp.ne.s32.totalorder %s180, %s196
      %p198 = scmp.eq.s32.totalorder %s27, 0
      %p199 = por %p197, %p198
      %s200 = ssub.s32 %s28, %s40
      %p201 = scmp.eq.s32.totalorder %s200, 0
      %s203 = sadd.s32 %s202, 1
      %s204 = scalar_select %p201, %s202, %s203
      %p207 = pneg %p201
      %p208 = scmp.eq.s32.totalorder %s21, 1
      %p209 = por %p207, %p208
      %p210 = scmp.ne.s32.totalorder %s202, %s205
      %p211 = scmp.eq.s32.totalorder %s21, 0
      %p212 = por %p210, %p211
      %p213 = scmp.ne.s32.totalorder %s202, %s205
      %p214 = scmp.eq.s32.totalorder %s26, 1
      %p215 = por %p213, %p214
      %p216 = scmp.ne.s32.totalorder %s205, %s206
      %p217 = scmp.eq.s32.totalorder %s26, 0
      %p218 = por %p216, %p217
      %p219 = scmp.ne.s32.totalorder %s205, %s206
      %p220 = scmp.eq.s32.totalorder %s27, 1
      %p221 = por %p219, %p220
      %p223 = scmp.ne.s32.totalorder %s206, %s222
      %p224 = scmp.eq.s32.totalorder %s27, 0
      %p225 = por %p223, %p224
      %p226 = scmp.le.s32.totalorder 1, %s21
      %p227 = scmp.lt.s32.totalorder %s21, 3
      %p228 = pnand %p226, %p227
      %p229 = pneg %p228
      // Predicated region
      $region9: #{tpu_custom_call.1} parent=5 // pred_check
        _
      $region10: #{tpu_custom_call.1} parent=5 // pred_check_branch
        %231 = sbr.rel (%p228) target = $region12
      $region11: #{tpu_custom_call.1} parent=5 // pred_region
        %s232 = ssub.s32 %s21, 1
        // Predicated region
        $region13: #{tpu_custom_call.1} parent=11 // pred_check
          %p233 = pneg %p82
        $region14: #{tpu_custom_call.1} parent=11 // pred_check_branch
          %235 = sbr.rel (%p233) target = $region16
        $region15: #{tpu_custom_call.1} parent=11 // pred_region
          _
        $region16: #{tpu_custom_call.1} parent=11 // pred_fallthru
          _
        // Predicated region
        $region17: #{tpu_custom_call.1} parent=11 // pred_check
          %p236 = pneg %p103
        $region18: #{tpu_custom_call.1} parent=11 // pred_check_branch
          %238 = sbr.rel (%p236) target = $region20
        $region19: #{tpu_custom_call.1} parent=11 // pred_region
          _
        $region20: #{tpu_custom_call.1} parent=11 // pred_fallthru
          _
        // Predicated region
        $region21: #{tpu_custom_call.1} parent=11 // pred_check
          %p239 = pneg %p124
        $region22: #{tpu_custom_call.1} parent=11 // pred_check_branch
          %241 = sbr.rel (%p239) target = $region24
        $region23: #{tpu_custom_call.1} parent=11 // pred_region
          _
        $region24: #{tpu_custom_call.1} parent=11 // pred_fallthru
          _
        // Predicated region
        $region25: #{tpu_custom_call.1} parent=11 // pred_check
          %p242 = pneg %p145
        $region26: #{tpu_custom_call.1} parent=11 // pred_check_branch
          %244 = sbr.rel (%p242) target = $region28
        $region27: #{tpu_custom_call.1} parent=11 // pred_region
          _
        $region28: #{tpu_custom_call.1} parent=11 // pred_fallthru
          _
        // Predicated region
        $region29: #{tpu_custom_call.1} parent=11 // pred_check
          %p245 = pneg %p166
        $region30: #{tpu_custom_call.1} parent=11 // pred_check_branch
          %247 = sbr.rel (%p245) target = $region32
        $region31: #{tpu_custom_call.1} parent=11 // pred_region
          %249 = vsyncadd [#allocation5], 0
          %s251 = sshll.u32 %s5, 4
          %s252 = int_to_ptr.vmem [resolvable:$true] %s251
          %254 = dma.vmem_to_smem %s252, 16, [#allocation3], [#allocation5]
        $region32: #{tpu_custom_call.1} parent=11 // pred_fallthru
          _
      $region12: #{tpu_custom_call.1} parent=5 // pred_fallthru
        _
      %p255 = scmp.lt.s32.totalorder %s21, 2
      // Predicated region
      $region33: #{tpu_custom_call.1} parent=5 // pred_check
        %p256 = pneg %p255
      $region34: #{tpu_custom_call.1} parent=5 // pred_check_branch
        %258 = sbr.rel (%p256) target = $region36
      $region35: #{tpu_custom_call.1} parent=5 // pred_region
        // Predicated region
        $region37: #{tpu_custom_call.1} parent=35 // pred_check
          %p259 = pneg %p55
        $region38: #{tpu_custom_call.1} parent=35 // pred_check_branch
          %261 = sbr.rel (%p259) target = $region40
        $region39: #{tpu_custom_call.1} parent=35 // pred_region
          %s262 = smul.u32 2, %s29
          %p263 = scmp.lt.s32.totalorder %s28, 1
          %s264 = scalar_select %p263, %s28, 1
          %p265 = scmp.lt.s32.totalorder %s262, 1
          %s266 = scalar_select %p265, %s262, 1
          %s267 = smul.addr %s264, 2
          %s268 = sadd.s32 %s266, %s267
          %s269 = smul.addr %s268, 2
          %s270 = scalar_lea.vmem %s0, %s269
          %s271 = smul.u32 2, %s29
        $region40: #{tpu_custom_call.1} parent=35 // pred_fallthru
          _
      $region36: #{tpu_custom_call.1} parent=5 // pred_fallthru
        _
      %p272 = scmp.le.s32.totalorder 1, %s21
      %p273 = scmp.lt.s32.totalorder %s21, 3
      %p274 = pnand %p272, %p273
      %p275 = pneg %p274
      // Predicated region
      $region41: #{tpu_custom_call.1} parent=5 // pred_check
        _
      $region42: #{tpu_custom_call.1} parent=5 // pred_check_branch
        %277 = sbr.rel (%p274) target = $region44
      $region43: #{tpu_custom_call.1} parent=5 // pred_region
        %s278 = ssub.s32 %s21, 1
        // Predicated region
        $region45: #{tpu_custom_call.1} parent=43 // pred_check
          %p279 = pneg %p166
        $region46: #{tpu_custom_call.1} parent=43 // pred_check_branch
          %281 = sbr.rel (%p279) target = $region48
        $region47: #{tpu_custom_call.1} parent=43 // pred_region
          %283 = dma.done [#allocation5], 16
        $region48: #{tpu_custom_call.1} parent=43 // pred_fallthru
          _
        %284 = sfence
        %s285 = smul.u32 2, %s31
        %p286 = scmp.lt.s32.totalorder %s30, 1
        %s287 = scalar_select %p286, %s30, 1
        %p288 = scmp.lt.s32.totalorder %s285, 1
        %s289 = scalar_select %p288, %s285, 1
        %s290 = smul.addr %s287, 2
        %s291 = sadd.s32 %s289, %s290
        %s292 = smul.addr %s291, 2
        %s293 = scalar_lea.vmem %s0, %s292
        %p294 = pneg %p61
        %p295 = pneg %p58
        %p296 = pneg %p82
        %p297 = pneg %p79
        %p298 = pneg %p103
        %p299 = pneg %p100
        %p300 = pneg %p124
        %p301 = pneg %p121
        %p302 = pneg %p145
        %p303 = pneg %p142
        %p304 = pneg %p166
        %p305 = pneg %p163
        %p306 = pneg %p192
        %p307 = pneg %p189
        %s308 = sand.u32 %s179, 1
        %s309 = scalar_lea.sflag [#allocation4], %s308
        %s310 = sand.u32 %s179, 1
        %s311 = scalar_lea.vmem [#allocation6], %s310
        %p312 = pneg %p218
        %p313 = pneg %p215
        %s314 = sand.u32 %s205, 1
        %s315 = scalar_lea.sflag [#allocation8], %s314
        %s316 = sand.u32 %s205, 1
        %s317 = scalar_lea.vmem [#allocation7], %s316
        %s318 = smul.u32 2, %s31
        %p319 = scmp.lt.s32.totalorder %s30, 1
        %s320 = scalar_select %p319, %s30, 1
        %p321 = scmp.lt.s32.totalorder %s318, 1
        %s322 = scalar_select %p321, %s318, 1
        %s323 = smul.addr %s320, 2
        %s324 = sadd.s32 %s322, %s323
        %s325 = smul.addr %s324, 2
        %s326 = scalar_lea.vmem %s0, %s325
        %s327 = smul.u32 2, %s31
        %p329 = scmp.eq.s32.totalorder %s31, 0
        // Predicated region
        $region49: #{tpu_custom_call.1} parent=43 // pred_check
          %p330 = pneg %p329
        $region50: #{tpu_custom_call.1} parent=43 // pred_check_branch
          %332 = sbr.rel (%p330) target = $region52
        $region51: #{tpu_custom_call.1} parent=43 // pred_region
          %333 = vst [vmem:[#allocation2] sm:$0xff] 0.0
          %334 = vst [vmem:[#allocation2 + $0x8] sm:$0xff] 0.0
          %335 = vst [vmem:[#allocation2 + $0x10] sm:$0xff] 0.0
          %336 = vst [vmem:[#allocation2 + $0x18] sm:$0xff] 0.0
          %337 = vst [vmem:[#allocation2 + $0x20] sm:$0xff] 0.0
          %338 = vst [vmem:[#allocation2 + $0x28] sm:$0xff] 0.0
          %339 = vst [vmem:[#allocation2 + $0x30] sm:$0xff] 0.0
          %340 = vst [vmem:[#allocation2 + $0x38] sm:$0xff] 0.0
          %341 = vst [vmem:[#allocation2 + $0x40] sm:$0xff] 0.0
          %342 = vst [vmem:[#allocation2 + $0x48] sm:$0xff] 0.0
          %343 = vst [vmem:[#allocation2 + $0x50] sm:$0xff] 0.0
          %344 = vst [vmem:[#allocation2 + $0x58] sm:$0xff] 0.0
          %345 = vst [vmem:[#allocation2 + $0x60] sm:$0xff] 0.0
          %346 = vst [vmem:[#allocation2 + $0x68] sm:$0xff] 0.0
          %347 = vst [vmem:[#allocation2 + $0x70] sm:$0xff] 0.0
          %348 = vst [vmem:[#allocation2 + $0x78] sm:$0xff] 0.0
        $region52: #{tpu_custom_call.1} parent=43 // pred_fallthru
          _
        %v349 = vld [vmem:[%s326] sm:$0xf]
        %v350 = vld [vmem:[%s1] sm:$0xf]
        %v351 = vld [vmem:[%s1 + $0x4] sm:$0xf]
        %v352 = vld [vmem:[%s1 + $0x8] sm:$0xf]
        %v353 = vld [vmem:[%s1 + $0xc] sm:$0xf]
        %v354 = vld [vmem:[%s1 + $0x10] sm:$0xf]
        %v355 = vld [vmem:[%s1 + $0x14] sm:$0xf]
        %v356 = vld [vmem:[%s1 + $0x18] sm:$0xf]
        %v357 = vld [vmem:[%s1 + $0x1c] sm:$0xf]
        %v358 = vld [vmem:[%s1 + $0x20] sm:$0xf]
        %v359 = vld [vmem:[%s1 + $0x24] sm:$0xf]
        %v360 = vld [vmem:[%s1 + $0x28] sm:$0xf]
        %v361 = vld [vmem:[%s1 + $0x2c] sm:$0xf]
        %v362 = vld [vmem:[%s1 + $0x30] sm:$0xf]
        %v363 = vld [vmem:[%s1 + $0x34] sm:$0xf]
        %v364 = vld [vmem:[%s1 + $0x38] sm:$0xf]
        %v365 = vld [vmem:[%s1 + $0x3c] sm:$0xf]
        %v366 = vld [vmem:[%s2] sm:$0xff]
        %v367 = vld [vmem:[%s2 + $0x8] sm:$0xff]
        %v368 = vld [vmem:[%s2 + $0x10] sm:$0xff]
        %v369 = vld [vmem:[%s2 + $0x18] sm:$0xff]
        %v370 = vld [vmem:[%s2 + $0x20] sm:$0xff]
        %v371 = vld [vmem:[%s2 + $0x28] sm:$0xff]
        %v372 = vld [vmem:[%s2 + $0x30] sm:$0xff]
        %v373 = vld [vmem:[%s2 + $0x38] sm:$0xff]
        %v374 = vld [vmem:[%s2 + $0x40] sm:$0xff]
        %v375 = vld [vmem:[%s2 + $0x48] sm:$0xff]
        %v376 = vld [vmem:[%s2 + $0x50] sm:$0xff]
        %v377 = vld [vmem:[%s2 + $0x58] sm:$0xff]
        %v378 = vld [vmem:[%s2 + $0x60] sm:$0xff]
        %v379 = vld [vmem:[%s2 + $0x68] sm:$0xff]
        %v380 = vld [vmem:[%s2 + $0x70] sm:$0xff]
        %v381 = vld [vmem:[%s2 + $0x78] sm:$0xff]
        %383 = vset.pattern.permute.xlu0 0
        %384 = vperm.xlu0 %383, %v366
        %v385 = vpop.permute.xlu0 %384
        %388 = vset.pattern.permute.xlu0 0
        %389 = vperm.xlu0 %388, %v367
        %v390 = vpop.permute.xlu0 %389
        %393 = vset.pattern.permute.xlu0 0
        %394 = vperm.xlu0 %393, %v368
        %v395 = vpop.permute.xlu0 %394
        %398 = vset.pattern.permute.xlu0 0
        %399 = vperm.xlu0 %398, %v369
        %v400 = vpop.permute.xlu0 %399
        %403 = vset.pattern.permute.xlu0 0
        %404 = vperm.xlu0 %403, %v370
        %v405 = vpop.permute.xlu0 %404
        %408 = vset.pattern.permute.xlu0 0
        %409 = vperm.xlu0 %408, %v371
        %v410 = vpop.permute.xlu0 %409
        %413 = vset.pattern.permute.xlu0 0
        %414 = vperm.xlu0 %413, %v372
        %v415 = vpop.permute.xlu0 %414
        %418 = vset.pattern.permute.xlu0 0
        %419 = vperm.xlu0 %418, %v373
        %v420 = vpop.permute.xlu0 %419
        %423 = vset.pattern.permute.xlu0 0
        %424 = vperm.xlu0 %423, %v374
        %v425 = vpop.permute.xlu0 %424
        %428 = vset.pattern.permute.xlu0 0
        %429 = vperm.xlu0 %428, %v375
        %v430 = vpop.permute.xlu0 %429
        %433 = vset.pattern.permute.xlu0 0
        %434 = vperm.xlu0 %433, %v376
        %v435 = vpop.permute.xlu0 %434
        %438 = vset.pattern.permute.xlu0 0
        %439 = vperm.xlu0 %438, %v377
        %v440 = vpop.permute.xlu0 %439
        %443 = vset.pattern.permute.xlu0 0
        %444 = vperm.xlu0 %443, %v378
        %v445 = vpop.permute.xlu0 %444
        %448 = vset.pattern.permute.xlu0 0
        %449 = vperm.xlu0 %448, %v379
        %v450 = vpop.permute.xlu0 %449
        %453 = vset.pattern.permute.xlu0 0
        %454 = vperm.xlu0 %453, %v380
        %v455 = vpop.permute.xlu0 %454
        %458 = vset.pattern.permute.xlu0 0
        %459 = vperm.xlu0 %458, %v381
        %v460 = vpop.permute.xlu0 %459
        %v478 = vunpack.c.l.b16 %v350
        %v479 = vunpack.c.l.b16 %v351
        %v480 = vunpack.c.l.b16 %v352
        %v481 = vunpack.c.l.b16 %v353
        %v482 = vunpack.c.l.b16 %v354
        %v483 = vunpack.c.l.b16 %v355
        %v484 = vunpack.c.l.b16 %v356
        %v485 = vunpack.c.l.b16 %v357
        %v486 = vunpack.c.l.b16 %v358
        %v487 = vunpack.c.l.b16 %v359
        %v488 = vunpack.c.l.b16 %v360
        %v489 = vunpack.c.l.b16 %v361
        %v490 = vunpack.c.l.b16 %v362
        %v491 = vunpack.c.l.b16 %v363
        %v492 = vunpack.c.l.b16 %v364
        %v493 = vunpack.c.l.b16 %v365
        %v494 = vpack.c.b16 %v479, %v478
        %v495 = vpack.c.b16 %v481, %v480
        %v496 = vpack.c.b16 %v483, %v482
        %v497 = vpack.c.b16 %v485, %v484
        %v498 = vpack.c.b16 %v487, %v486
        %v499 = vpack.c.b16 %v489, %v488
        %v500 = vpack.c.b16 %v491, %v490
        %v501 = vpack.c.b16 %v493, %v492
        %503 = vst [vmem:[#allocation1] ss:$4 sm:$0xff] %v349
        %v504 = vld.sshfl [vmem:[#allocation1] sm:$0xff pattern:$0x73625140]
        %v505 = vld.sshfl [vmem:[#allocation1 + $0x8] sm:$0xff pattern:$0x73625140]
        %vm506 = vcmask 31744
        %v508 = vsel %vm506, %v494, 0
        %v511 = vsel %vm506, %v495, 0
        %v514 = vsel %vm506, %v496, 0
        %v517 = vsel %vm506, %v497, 0
        %v520 = vsel %vm506, %v498, 0
        %v523 = vsel %vm506, %v499, 0
        %v526 = vsel %vm506, %v500, 0
        %v529 = vsel %vm506, %v501, 0
        %vm531 = vcmask 1041408
        %v532 = vsel %vm531, %v504, 0
        %v534 = vsel %vm531, %v505, 0
        %536 = vmatpush.bf16.msra.mxu0 0
        %537 = vmatpush.bf16.msra.mxu0 0
        %538 = vmatpush.bf16.msra.mxu0 0
        %539 = vmatpush.bf16.msra.mxu0 0
        %540 = vmatpush.bf16.msra.mxu0 0
        %541 = vmatpush.bf16.msra.mxu0 0
        %542 = vmatpush.bf16.msra.mxu0 0
        %543 = vmatpush.bf16.msra.mxu0 %v532
        %544 = vmatmul.bf16.gmra.mxu0 %v508
        %v545 = vpop.f32.mrf.mxu0
        %v546 = vadd.f32 %v385, %v545
        %v547 = vpop.f32.mrf.mxu0
        %v548 = vadd.f32 %v390, %v547
        %549 = vmatmul.bf16.gmra.mxu0 %v511
        %v550 = vpop.f32.mrf.mxu0
        %v551 = vadd.f32 %v395, %v550
        %v552 = vpop.f32.mrf.mxu0
        %v553 = vadd.f32 %v400, %v552
        %554 = vmatmul.bf16.gmra.mxu0 %v514
        %v555 = vpop.f32.mrf.mxu0
        %v556 = vadd.f32 %v405, %v555
        %v557 = vpop.f32.mrf.mxu0
        %v558 = vadd.f32 %v410, %v557
        %559 = vmatmul.bf16.gmra.mxu0 %v517
        %v560 = vpop.f32.mrf.mxu0
        %v561 = vadd.f32 %v415, %v560
        %v562 = vpop.f32.mrf.mxu0
        %v563 = vadd.f32 %v420, %v562
        %564 = vmatmul.bf16.gmra.mxu0 %v520
        %v565 = vpop.f32.mrf.mxu0
        %v566 = vadd.f32 %v425, %v565
        %v567 = vpop.f32.mrf.mxu0
        %v568 = vadd.f32 %v430, %v567
        %569 = vmatmul.bf16.gmra.mxu0 %v523
        %v570 = vpop.f32.mrf.mxu0
        %v571 = vadd.f32 %v435, %v570
        %v572 = vpop.f32.mrf.mxu0
        %v573 = vadd.f32 %v440, %v572
        %574 = vmatmul.bf16.gmra.mxu0 %v526
        %v575 = vpop.f32.mrf.mxu0
        %v576 = vadd.f32 %v445, %v575
        %v577 = vpop.f32.mrf.mxu0
        %v578 = vadd.f32 %v450, %v577
        %579 = vmatmul.bf16.gmra.mxu0 %v529
        %v580 = vpop.f32.mrf.mxu0
        %v581 = vadd.f32 %v455, %v580
        %v582 = vpop.f32.mrf.mxu0
        %v583 = vadd.f32 %v460, %v582
        %584 = vdwg.mxu0
        %585 = vmatpush.bf16.msra.mxu0 0
        %586 = vmatpush.bf16.msra.mxu0 0
        %587 = vmatpush.bf16.msra.mxu0 0
        %588 = vmatpush.bf16.msra.mxu0 0
        %589 = vmatpush.bf16.msra.mxu0 0
        %590 = vmatpush.bf16.msra.mxu0 0
        %591 = vmatpush.bf16.msra.mxu0 0
        %592 = vmatpush.bf16.msra.mxu0 %v534
        %593 = vmatmul.bf16.gmra.mxu0 %v508
        %v594 = vpop.f32.mrf.mxu0
        %v595 = vadd.f32 %v385, %v594
        %v596 = vpop.f32.mrf.mxu0
        %v597 = vadd.f32 %v390, %v596
        %598 = vmatmul.bf16.gmra.mxu0 %v511
        %v599 = vpop.f32.mrf.mxu0
        %v600 = vadd.f32 %v395, %v599
        %v601 = vpop.f32.mrf.mxu0
        %v602 = vadd.f32 %v400, %v601
        %603 = vmatmul.bf16.gmra.mxu0 %v514
        %v604 = vpop.f32.mrf.mxu0
        %v605 = vadd.f32 %v405, %v604
        %v606 = vpop.f32.mrf.mxu0
        %v607 = vadd.f32 %v410, %v606
        %608 = vmatmul.bf16.gmra.mxu0 %v517
        %v609 = vpop.f32.mrf.mxu0
        %v610 = vadd.f32 %v415, %v609
        %v611 = vpop.f32.mrf.mxu0
        %v612 = vadd.f32 %v420, %v611
        %613 = vmatmul.bf16.gmra.mxu0 %v520
        %v614 = vpop.f32.mrf.mxu0
        %v615 = vadd.f32 %v425, %v614
        %v616 = vpop.f32.mrf.mxu0
        %v617 = vadd.f32 %v430, %v616
        %618 = vmatmul.bf16.gmra.mxu0 %v523
        %v619 = vpop.f32.mrf.mxu0
        %v620 = vadd.f32 %v435, %v619
        %v621 = vpop.f32.mrf.mxu0
        %v622 = vadd.f32 %v440, %v621
        %623 = vmatmul.bf16.gmra.mxu0 %v526
        %v624 = vpop.f32.mrf.mxu0
        %v625 = vadd.f32 %v445, %v624
        %v626 = vpop.f32.mrf.mxu0
        %v627 = vadd.f32 %v450, %v626
        %628 = vmatmul.bf16.gmra.mxu0 %v529
        %v629 = vpop.f32.mrf.mxu0
        %v630 = vadd.f32 %v455, %v629
        %v631 = vpop.f32.mrf.mxu0
        %v632 = vadd.f32 %v460, %v631
        %633 = vdwg.mxu0
        %v634 = vmax.f32 %v546, 0.0
        %v635 = vmax.f32 %v595, 0.0
        %v636 = vmax.f32 %v548, 0.0
        %v637 = vmax.f32 %v597, 0.0
        %v638 = vmax.f32 %v551, 0.0
        %v639 = vmax.f32 %v600, 0.0
        %v640 = vmax.f32 %v553, 0.0
        %v641 = vmax.f32 %v602, 0.0
        %v642 = vmax.f32 %v556, 0.0
        %v643 = vmax.f32 %v605, 0.0
        %v644 = vmax.f32 %v558, 0.0
        %v645 = vmax.f32 %v607, 0.0
        %v646 = vmax.f32 %v561, 0.0
        %v647 = vmax.f32 %v610, 0.0
        %v648 = vmax.f32 %v563, 0.0
        %v649 = vmax.f32 %v612, 0.0
        %v650 = vmax.f32 %v566, 0.0
        %v651 = vmax.f32 %v615, 0.0
        %v652 = vmax.f32 %v568, 0.0
        %v653 = vmax.f32 %v617, 0.0
        %v654 = vmax.f32 %v571, 0.0
        %v655 = vmax.f32 %v620, 0.0
        %v656 = vmax.f32 %v573, 0.0
        %v657 = vmax.f32 %v622, 0.0
        %v658 = vmax.f32 %v576, 0.0
        %v659 = vmax.f32 %v625, 0.0
        %v660 = vmax.f32 %v578, 0.0
        %v661 = vmax.f32 %v627, 0.0
        %v662 = vmax.f32 %v581, 0.0
        %v663 = vmax.f32 %v630, 0.0
        %v664 = vmax.f32 %v583, 0.0
        %v665 = vmax.f32 %v632, 0.0
        %v666 = vadd.f32 %v634, %v635
        %v667 = vadd.f32 %v636, %v637
        %v668 = vadd.f32 %v638, %v639
        %v669 = vadd.f32 %v640, %v641
        %v670 = vadd.f32 %v642, %v643
        %v671 = vadd.f32 %v644, %v645
        %v672 = vadd.f32 %v646, %v647
        %v673 = vadd.f32 %v648, %v649
        %v674 = vadd.f32 %v650, %v651
        %v675 = vadd.f32 %v652, %v653
        %v676 = vadd.f32 %v654, %v655
        %v677 = vadd.f32 %v656, %v657
        %v678 = vadd.f32 %v658, %v659
        %v679 = vadd.f32 %v660, %v661
        %v680 = vadd.f32 %v662, %v663
        %v681 = vadd.f32 %v664, %v665
        %v682 = vld [vmem:[#allocation2] sm:$0xff]
        %v683 = vld [vmem:[#allocation2 + $0x8] sm:$0xff]
        %v684 = vld [vmem:[#allocation2 + $0x10] sm:$0xff]
        %v685 = vld [vmem:[#allocation2 + $0x18] sm:$0xff]
        %v686 = vld [vmem:[#allocation2 + $0x20] sm:$0xff]
        %v687 = vld [vmem:[#allocation2 + $0x28] sm:$0xff]
        %v688 = vld [vmem:[#allocation2 + $0x30] sm:$0xff]
        %v689 = vld [vmem:[#allocation2 + $0x38] sm:$0xff]
        %v690 = vld [vmem:[#allocation2 + $0x40] sm:$0xff]
        %v691 = vld [vmem:[#allocation2 + $0x48] sm:$0xff]
        %v692 = vld [vmem:[#allocation2 + $0x50] sm:$0xff]
        %v693 = vld [vmem:[#allocation2 + $0x58] sm:$0xff]
        %v694 = vld [vmem:[#allocation2 + $0x60] sm:$0xff]
        %v695 = vld [vmem:[#allocation2 + $0x68] sm:$0xff]
        %v696 = vld [vmem:[#allocation2 + $0x70] sm:$0xff]
        %v697 = vld [vmem:[#allocation2 + $0x78] sm:$0xff]
        %v698 = vadd.f32 %v682, %v666
        %v699 = vadd.f32 %v683, %v667
        %v700 = vadd.f32 %v684, %v668
        %v701 = vadd.f32 %v685, %v669
        %v702 = vadd.f32 %v686, %v670
        %v703 = vadd.f32 %v687, %v671
        %v704 = vadd.f32 %v688, %v672
        %v705 = vadd.f32 %v689, %v673
        %v706 = vadd.f32 %v690, %v674
        %v707 = vadd.f32 %v691, %v675
        %v708 = vadd.f32 %v692, %v676
        %v709 = vadd.f32 %v693, %v677
        %v710 = vadd.f32 %v694, %v678
        %v711 = vadd.f32 %v695, %v679
        %v712 = vadd.f32 %v696, %v680
        %v713 = vadd.f32 %v697, %v681
        %714 = vst [vmem:[#allocation2] sm:$0xff] %v698
        %715 = vst [vmem:[#allocation2 + $0x8] sm:$0xff] %v699
        %716 = vst [vmem:[#allocation2 + $0x10] sm:$0xff] %v700
        %717 = vst [vmem:[#allocation2 + $0x18] sm:$0xff] %v701
        %718 = vst [vmem:[#allocation2 + $0x20] sm:$0xff] %v702
        %719 = vst [vmem:[#allocation2 + $0x28] sm:$0xff] %v703
        %720 = vst [vmem:[#allocation2 + $0x30] sm:$0xff] %v704
        %721 = vst [vmem:[#allocation2 + $0x38] sm:$0xff] %v705
        %722 = vst [vmem:[#allocation2 + $0x40] sm:$0xff] %v706
        %723 = vst [vmem:[#allocation2 + $0x48] sm:$0xff] %v707
        %724 = vst [vmem:[#allocation2 + $0x50] sm:$0xff] %v708
        %725 = vst [vmem:[#allocation2 + $0x58] sm:$0xff] %v709
        %726 = vst [vmem:[#allocation2 + $0x60] sm:$0xff] %v710
        %727 = vst [vmem:[#allocation2 + $0x68] sm:$0xff] %v711
        %728 = vst [vmem:[#allocation2 + $0x70] sm:$0xff] %v712
        %729 = vst [vmem:[#allocation2 + $0x78] sm:$0xff] %v713
        // Predicated region
        $region53: #{tpu_custom_call.1} parent=43 // pred_check
          %p730 = pneg %p329
        $region54: #{tpu_custom_call.1} parent=43 // pred_check_branch
          %732 = sbr.rel (%p730) target = $region56
        $region55: #{tpu_custom_call.1} parent=43 // pred_region
          %v733 = vld [vmem:[#allocation2] sm:$0xff]
          %v734 = vld [vmem:[#allocation2 + $0x8] sm:$0xff]
          %v735 = vld [vmem:[#allocation2 + $0x10] sm:$0xff]
          %v736 = vld [vmem:[#allocation2 + $0x18] sm:$0xff]
          %v737 = vld [vmem:[#allocation2 + $0x20] sm:$0xff]
          %v738 = vld [vmem:[#allocation2 + $0x28] sm:$0xff]
          %v739 = vld [vmem:[#allocation2 + $0x30] sm:$0xff]
          %v740 = vld [vmem:[#allocation2 + $0x38] sm:$0xff]
          %v741 = vld [vmem:[#allocation2 + $0x40] sm:$0xff]
          %v742 = vld [vmem:[#allocation2 + $0x48] sm:$0xff]
          %v743 = vld [vmem:[#allocation2 + $0x50] sm:$0xff]
          %v744 = vld [vmem:[#allocation2 + $0x58] sm:$0xff]
          %v745 = vld [vmem:[#allocation2 + $0x60] sm:$0xff]
          %v746 = vld [vmem:[#allocation2 + $0x68] sm:$0xff]
          %v747 = vld [vmem:[#allocation2 + $0x70] sm:$0xff]
          %v748 = vld [vmem:[#allocation2 + $0x78] sm:$0xff]
          %749 = vmatpush.xpose.msra.mxu0 %v748
          %750 = vmatpush.xpose.msra.mxu0 %v747
          %751 = vmatpush.xpose.msra.mxu0 %v746
          %752 = vmatpush.xpose.msra.mxu0 %v745
          %753 = vmatpush.xpose.msra.mxu0 %v744
          %754 = vmatpush.xpose.msra.mxu0 %v743
          %755 = vmatpush.xpose.msra.mxu0 %v742
          %756 = vmatpush.xpose.msra.mxu0 %v741
          %757 = vmatpush.xpose.msra.mxu0 %v740
          %758 = vmatpush.xpose.msra.mxu0 %v739
          %759 = vmatpush.xpose.msra.mxu0 %v738
          %760 = vmatpush.xpose.msra.mxu0 %v737
          %761 = vmatpush.xpose.msra.mxu0 %v736
          %762 = vmatpush.xpose.msra.mxu0 %v735
          %763 = vmatpush.xpose.msra.mxu0 %v734
          %764 = vmatpush.xpose.msra.mxu0 %v733
          %765 = vmatmul.f32.gmra.mxu0 1.0
          %v766 = vpop.f32.mrf.mxu0
          %v767 = vadd.f32 0.0, %v766
          %768 = vdwg.mxu0
          %v769 = vmul.f32 %v767, 0.00390625
          %v770 = vmul.f32 %v769, %v769
          %vm771 = vcmask 1040384
          %v772 = vsel %vm771, %v770, 0.0
          %773 = vadd.xlane.f32.xlu0 %v772
          %v774 = vpop.xlane.xlu0 %773
          %v775 = vrsqrt.pop %v774
          %v776 = vmul.f32 %v775, %v774
          %v777 = vmul.f32 %v776, %v775
          %v778 = vmul.f32 0.5, %v777
          %v779 = vsub.f32 1.5, %v778
          %v780 = vmul.f32 %v775, %v779
          %v781 = vmul.f32 %v774, %v780
          %vm782 = vcmp.eq.f32.partialorder %v774, inf
          %v783 = vsel %vm782, %v774, %v781
          %vm784 = vcmp.eq.f32.partialorder %v774, 0.0
          %v785 = vand.u32 %v774, 2147483648
          %v786 = vsel %vm784, %v785, %v783
          %s787 = sld [smem:[#allocation3]]
          %v788 = vstv %s787
          %v789 = vsub.f32 %v786, %v788
          %s790 = sld [smem:[#allocation3 + $0x1]]
          %v791 = vstv %s790
          %v792 = vmul.f32 %v789, %v791
          %v793 = vmul.f32 %v792, %v792
          %s794 = sld [smem:[#allocation3 + $0x3]]
          %v795 = vstv %s794
          %v796 = vmul.f32 %v795, %v792
          %v797 = vadd.f32 %v796, 0.0
          %v798 = vmul.f32 %v792, %v793
          %s799 = sld [smem:[#allocation3 + $0x4]]
          %v800 = vstv %s799
          %v801 = vmul.f32 %v800, %v798
          %v802 = vadd.f32 %v797, %v801
          %v803 = vmul.f32 %v798, %v793
          %s804 = sld [smem:[#allocation3 + $0x5]]
          %v805 = vstv %s804
          %v806 = vmul.f32 %v805, %v803
          %v807 = vadd.f32 %v802, %v806
          %v808 = vmul.f32 %v803, %v793
          %s809 = sld [smem:[#allocation3 + $0x6]]
          %v810 = vstv %s809
          %v811 = vmul.f32 %v810, %v808
          %v812 = vadd.f32 %v807, %v811
          %v813 = vmul.f32 %v808, %v793
          %s814 = sld [smem:[#allocation3 + $0x7]]
          %v815 = vstv %s814
          %v816 = vmul.f32 %v815, %v813
          %v817 = vadd.f32 %v812, %v816
          %s818 = sld [smem:[#allocation3 + $0x2]]
          %v819 = vstv %s818
          %v820 = vsub.f32 %v817, %v819
          %v821 = vld [vmem:[%s3] sm:$0x1]
          %v822 = vmul.f32 %v769, %v821
          %v823 = vld [vmem:[%s4] sm:$0x1]
          %v824 = vadd.f32 %v822, %v823
          %v825 = vmul.f32 %v824, %v824
          %v826 = vsel %vm771, %v825, 0.0
          %827 = vadd.xlane.f32.xlu0 %v826
          %v828 = vpop.xlane.xlu0 %827
          %v829 = vrsqrt.pop %v828
          %v830 = vmul.f32 %v829, %v828
          %v831 = vmul.f32 %v830, %v829
          %v832 = vmul.f32 0.5, %v831
          %v833 = vsub.f32 1.5, %v832
          %v834 = vmul.f32 %v829, %v833
          %v835 = vmul.f32 %v828, %v834
          %vm836 = vcmp.eq.f32.partialorder %v828, inf
          %v837 = vsel %vm836, %v828, %v835
          %vm838 = vcmp.eq.f32.partialorder %v828, 0.0
          %v839 = vand.u32 %v828, 2147483648
          %v840 = vsel %vm838, %v839, %v837
          %v841 = vmax.f32 %v840, 1e-12
          %v842 = vrcp.pop %v841
          %v843 = vmul.f32 %v841, %v842
          %v844 = vsub.f32 1.0, %v843
          %v845 = vmul.f32 %v842, %v844
          %v846 = vadd.f32 %v842, %v845
          %vm847 = vweird.f32 %v841
          %vm848 = vweird.f32 %v842
          %vm849 = vmor %vm847, %vm848
          %v850 = vsel %vm849, %v842, %v846
          %v851 = vand.u32 2147483647, %v841
          %vm852 = vcmp.eq.f32.partialorder %v851, 8.507059e+37
          %v853 = vand.u32 %v841, 2147483648
          %v854 = vor.u32 1.1754944e-38, %v853
          %v855 = vsel %vm852, %v854, %v850
          %v856 = vmul.f32 %v786, %v855
          %v857 = vmul.f32 %v824, %v856
          %858 = vst [vmem:[%s311] sm:$0x1] %v857
          %859 = vst [vmem:[%s317] sm:$0x1] %v820
        $region56: #{tpu_custom_call.1} parent=43 // pred_fallthru
          _
        %s860 = sand.u32 %s179, 1
        %s861 = scalar_lea.sflag [#allocation4], %s860
        %s862 = sand.u32 %s179, 1
        %s863 = scalar_lea.vmem [#allocation6], %s862
        %s864 = sand.u32 %s205, 1
        %s865 = scalar_lea.sflag [#allocation8], %s864
        %s866 = sand.u32 %s205, 1
        %s867 = scalar_lea.vmem [#allocation7], %s866
        // Predicated region
        $region57: #{tpu_custom_call.1} parent=43 // pred_check
          %p868 = pneg %p189
        $region58: #{tpu_custom_call.1} parent=43 // pred_check_branch
          %870 = sbr.rel (%p868) target = $region60
        $region59: #{tpu_custom_call.1} parent=43 // pred_region
          %872 = vsyncadd %s861, 0
          %s873 = scalar_lea.hbm %s6, %s30
          %s875 = sshll.u32 %s863, 4
          %s876 = int_to_ptr.vmem [resolvable:$true] %s875
          %s877 = sshll.u32 %s873, 4
          %s878 = int_to_ptr.hbm [resolvable:$true] %s877
          %880 = dma.vmem_to_hbm [thread:$0]  %s876, 16, %s878, %s861
        $region60: #{tpu_custom_call.1} parent=43 // pred_fallthru
          _
        // Predicated region
        $region61: #{tpu_custom_call.1} parent=43 // pred_check
          %p881 = pneg %p215
        $region62: #{tpu_custom_call.1} parent=43 // pred_check_branch
          %883 = sbr.rel (%p881) target = $region64
        $region63: #{tpu_custom_call.1} parent=43 // pred_region
          %885 = vsyncadd %s865, 0
          %s886 = scalar_lea.hbm %s7, %s30
          %s888 = sshll.u32 %s867, 4
          %s889 = int_to_ptr.vmem [resolvable:$true] %s888
          %s890 = sshll.u32 %s886, 4
          %s891 = int_to_ptr.hbm [resolvable:$true] %s890
          %893 = dma.vmem_to_hbm [thread:$0]  %s889, 16, %s891, %s865
        $region64: #{tpu_custom_call.1} parent=43 // pred_fallthru
          _
      $region44: #{tpu_custom_call.1} parent=5 // pred_fallthru
        _
      %p894 = scmp.le.s32.totalorder 2, %s21
      // Predicated region
      $region65: #{tpu_custom_call.1} parent=5 // pred_check
        %p895 = pneg %p894
      $region66: #{tpu_custom_call.1} parent=5 // pred_check_branch
        %897 = sbr.rel (%p895) target = $region68
      $region67: #{tpu_custom_call.1} parent=5 // pred_region
        %s898 = ssub.s32 %s21, 2
        // Predicated region
        $region69: #{tpu_custom_call.1} parent=67 // pred_check
          %p899 = pneg %p195
        $region70: #{tpu_custom_call.1} parent=67 // pred_check_branch
          %901 = sbr.rel (%p899) target = $region72
        $region71: #{tpu_custom_call.1} parent=67 // pred_region
          %s902 = sand.u32 %s180, 1
          %s903 = scalar_lea.sflag [#allocation4], %s902
          %s904 = sand.u32 %s180, 1
          %s905 = scalar_lea.vmem [#allocation6], %s904
          %907 = dma.done %s903, 16
        $region72: #{tpu_custom_call.1} parent=67 // pred_fallthru
          _
        // Predicated region
        $region73: #{tpu_custom_call.1} parent=67 // pred_check
          %p908 = pneg %p221
        $region74: #{tpu_custom_call.1} parent=67 // pred_check_branch
          %910 = sbr.rel (%p908) target = $region76
        $region75: #{tpu_custom_call.1} parent=67 // pred_region
          %s911 = sand.u32 %s206, 1
          %s912 = scalar_lea.sflag [#allocation8], %s911
          %s913 = sand.u32 %s206, 1
          %s914 = scalar_lea.vmem [#allocation7], %s913
          %916 = dma.done %s912, 16
        $region76: #{tpu_custom_call.1} parent=67 // pred_fallthru
          _
      $region68: #{tpu_custom_call.1} parent=5 // pred_fallthru
        _
    $region6: #{tpu_custom_call.1} parent=1 // loop_footer
      %s25 = sadd.s32 1, %s21
    $region7: #{tpu_custom_call.1} parent=1 // loop_footer_branch
      %20 = sbr.rel target = $region3
    $region8: #{tpu_custom_call.1} parent=1 // loop_exit
      _
    %917 = vsyncpa [#allocation4], 1
    %s918 = scalar_lea.sflag [#allocation4], 1
    %919 = vsyncpa %s918, 1
    %920 = vsyncpa [#allocation8], 1
    %s921 = scalar_lea.sflag [#allocation8], 1
    %922 = vsyncpa %s921, 1
    %923 = vsyncpa [#allocation5], 1
    %s924 = scalar_lea.sflag [#allocation5], 1
    %925 = vsyncpa %s924, 1

</llo_original>
